<compile_context>
chip_gen: v7x
topology: tpu7x:2x2x1
jax: 0.10.0
libtpu: 0.0.40
codegen_flags: <defaults>
</compile_context>

<pallas_src>
import functools

import jax
import jax.numpy as jnp
from jax.experimental import pallas as pl
from jax.experimental.pallas import tpu as pltpu


def prep_kernel(data_ref, w01_ref, o_ref, *, emb_dim):
    """o[b, l*K + k] = W1t[k] if class_of_lane(k) == data[b, l] else W0t[k].

    data_ref: (Bt, L) int32      categorical codes
    w01_ref : (2, K)  float32    row j = tile(W[j], C)  (K = C*E)
    o_ref   : (Bt, L*K) float32  flat, lane-dense output tile
    """
    Bt, L = data_ref.shape
    K = w01_ref.shape[1]
    E = emb_dim

    # Hoisted once per grid step (kept out of the per-l loop).
    w0 = jnp.broadcast_to(w01_ref[0:1, :], (Bt, K))                 # (Bt, K)
    w1 = jnp.broadcast_to(w01_ref[1:2, :], (Bt, K))                 # (Bt, K)
    k_iota = jax.lax.broadcasted_iota(jnp.int32, (Bt, K), 1)        # lane index k

    # Static unroll over the (small) categorical-feature axis; each iteration
    # emits one K-wide lane slice of the flat output row.
    for l in range(L):
        lo = data_ref[:, l:l + 1] * E                               # (Bt, 1)
        sel = (k_iota >= lo) & (k_iota < lo + E)                    # class(k) == data
        o_ref[:, l * K:(l + 1) * K] = jnp.where(sel, w1, w0)


def _round_up(x, m):
    return (x + m - 1) // m * m


def _pick_block_b(B, L, K, budget_bytes=12 << 20):
    """Largest layout-legal batch tile within the VMEM budget.

    Legal: block_b is a multiple of 8 (sublane tiling) or the full batch.
    Budget accounts for the real footprint: double-buffered input + output +
    constant tiles (with TPU (8,128) layout padding) plus in-kernel temporaries.
    Capped at ~B/2 so the grid keeps >= 2 steps (both v7x TensorCores busy)."""
    if B <= 8:
        return B                                   # full-batch block (always legal)

    lp = _round_up(L, 128)                         # padded lanes of the int32 data tile
    lkp = _round_up(L * K, 128)                    # padded lanes of the f32 output tile
    kp = _round_up(K, 128)
    const_bytes = 2 * 8 * kp * 4                   # (2, K) weights, double buffered
    per_row = (2 * (lp + lkp) + 6 * kp) * 4        # 2x(in+out tiles) + kernel temporaries

    max_rows = max(8, (budget_bytes - const_bytes) // per_row // 8 * 8)
    cap = max(8, (B // 2) // 8 * 8)                # grid >= 2, sublane aligned
    return min(cap, max_rows)


def sample_data_preparation(data, emb_weight, num_classes, *, block_b=None):
    """data: (B, L) ints in [0, num_classes); emb_weight: (num_embedding, E) f32.

    Returns (B, L * num_classes * E) f32, matching
    torch.flatten(Embedding(one_hot(data, num_classes)), start_dim=1)."""
    B, L = data.shape
    E = emb_weight.shape[1]
    C = num_classes
    K = C * E

    # One-off tiny constant: one-hot values are only 0/1, so only embedding rows
    # 0 and 1 are ever selected. w01t[j, c*E + e] = W[j, e].
    w01t = jnp.tile(emb_weight[0:2, :], (1, C))            # (2, K)

    data2 = data.astype(jnp.int32)                         # (B, L) -- no lane-padding reshape

    if block_b is None:
        block_b = _pick_block_b(B, L, K)
    assert block_b >= 1
    grid = (pl.cdiv(B, block_b),)                          # ragged last block handled by Pallas

    kernel = functools.partial(prep_kernel, emb_dim=E)

    out = pl.pallas_call(
        kernel,
        out_shape=jax.ShapeDtypeStruct((B, L * K), jnp.float32),
        grid_spec=pltpu.PrefetchScalarGridSpec(
            num_scalar_prefetch=0,
            grid=grid,
            in_specs=[
                pl.BlockSpec((block_b, L), lambda i: (i, 0)),   # data tile
                pl.BlockSpec((2, K), lambda i: (0, 0)),         # tiled weight rows (constant)
            ],
            out_specs=pl.BlockSpec((block_b, L * K), lambda i: (i, 0)),
        ),
        compiler_params=pltpu.CompilerParams(
            dimension_semantics=("parallel",),   # batch axis shards across v7x's 2 TCs
            vmem_limit_bytes=32 << 20,           # explicit scoped limit, safe on v5e/v6e/v7x
        ),
    )(data2, w01t)

    # Output is already the flat (B, L*C*E) layout torch.flatten produces.
    return out


def reference(data, emb_weight, num_classes):
    onehot = jax.nn.one_hot(data, num_classes, dtype=jnp.int32)   # (B, L, C) in {0,1}
    emb = jnp.take(emb_weight, onehot, axis=0)                    # (B, L, C, E)
    return emb.reshape(data.shape[0], -1)


if __name__ == "__main__":
    # Small shapes consistent with the module: batch=16, seq=8 categorical codes,
    # num_classes (max_var + 1) = 5, embedding table (num_embedding=8, dim=16).
    # TODO(synk): the data_name -> (max_var|max_loc) global lookup has no kernel
    # equivalent; num_classes is passed explicitly by the wrapper caller.
    B, L, C = 16, 8, 5
    NUM_EMBEDDING, E = 8, 16

    key = jax.random.PRNGKey(0)
    kd, ke = jax.random.split(key)
    data = jax.random.randint(kd, (B, L), 0, C, dtype=jnp.int32)
    # init_embedding_weights(): torch.nn.init.normal_(embed.weight)
    emb_weight = jax.random.normal(ke, (NUM_EMBEDDING, E), dtype=jnp.float32)

    out = sample_data_preparation(data, emb_weight, C)   # block_b=8 -> grid=(2,)
    out = jax.block_until_ready(out)

    ref = reference(data, emb_weight, C)
    assert out.shape == (B, L * C * E)
    assert jnp.allclose(out, ref, atol=1e-6, rtol=1e-6), "mismatch vs JAX reference"

    print("KERNEL_OK")
</pallas_src>

<mosaic_0001>
module attributes {stable_mosaic.version = 11 : i64} {
  func.func @prep_kernel(%arg0: i32, %arg1: memref<8x8xi32, #tpu.memory_space<vmem>>, %arg2: memref<2x80xf32, #tpu.memory_space<vmem>>, %arg3: memref<8x640xf32, #tpu.memory_space<vmem>>) attributes {dimension_semantics = [#tpu.dimension_semantics<parallel>], iteration_bounds = array<i64: 2>, scalar_prefetch = 0 : i64, scratch_operands = 0 : i64, tpu.core_type = #tpu.core_type<tc>, window_params = [{transform_indices = @transform_0, window_bounds = array<i64: 8, 8>}, {pipeline_mode = #tpu.pipeline_mode<synchronous>, transform_indices = @transform_1, window_bounds = array<i64: 2, 80>}, {transform_indices = @transform_2, window_bounds = array<i64: 8, 640>}]} {
    %c0 = arith.constant 0 : index
    %c0_0 = arith.constant 0 : index
    %0 = vector.load %arg2[%c0, %c0_0] : memref<2x80xf32, #tpu.memory_space<vmem>>, vector<1x80xf32>
    %1 = vector.shape_cast %0 : vector<1x80xf32> to vector<1x80xf32>
    %2 = vector.broadcast %1 : vector<1x80xf32> to vector<8x80xf32>
    %c1 = arith.constant 1 : index
    %c0_1 = arith.constant 0 : index
    %3 = vector.load %arg2[%c1, %c0_1] : memref<2x80xf32, #tpu.memory_space<vmem>>, vector<1x80xf32>
    %4 = vector.shape_cast %3 : vector<1x80xf32> to vector<1x80xf32>
    %5 = vector.broadcast %4 : vector<1x80xf32> to vector<8x80xf32>
    %6 = tpu.iota {dimensions = array<i32: 1>} : vector<8x80xi32>
    %c0_2 = arith.constant 0 : index
    %c0_3 = arith.constant 0 : index
    %7 = vector.load %arg1[%c0_2, %c0_3] : memref<8x8xi32, #tpu.memory_space<vmem>>, vector<8x1xi32>
    %c16_i32 = arith.constant 16 : i32
    %8 = vector.broadcast %c16_i32 : i32 to vector<8x1xi32>
    %9 = arith.muli %7, %8 : vector<8x1xi32>
    %10 = vector.broadcast %9 : vector<8x1xi32> to vector<8x80xi32>
    %11 = arith.cmpi sge, %6, %10 : vector<8x80xi32>
    %c16_i32_4 = arith.constant 16 : i32
    %12 = vector.broadcast %c16_i32_4 : i32 to vector<8x1xi32>
    %13 = arith.addi %9, %12 : vector<8x1xi32>
    %14 = vector.broadcast %13 : vector<8x1xi32> to vector<8x80xi32>
    %15 = arith.cmpi slt, %6, %14 : vector<8x80xi32>
    %16 = arith.andi %11, %15 : vector<8x80xi1>
    %17 = arith.select %16, %5, %2 : vector<8x80xi1>, vector<8x80xf32>
    %c0_5 = arith.constant 0 : index
    %c0_6 = arith.constant 0 : index
    %18 = vector.load %arg3[%c0_5, %c0_6] : memref<8x640xf32, #tpu.memory_space<vmem>>, vector<8x80xf32>
    tpu.vector_store %arg3[%c0_5, %c0_6], %17 {strides = array<i32>} : memref<8x640xf32, #tpu.memory_space<vmem>>, vector<8x80xf32>,
    %c0_7 = arith.constant 0 : index
    %c1_8 = arith.constant 1 : index
    %19 = vector.load %arg1[%c0_7, %c1_8] : memref<8x8xi32, #tpu.memory_space<vmem>>, vector<8x1xi32>
    %c16_i32_9 = arith.constant 16 : i32
    %20 = vector.broadcast %c16_i32_9 : i32 to vector<8x1xi32>
    %21 = arith.muli %19, %20 : vector<8x1xi32>
    %22 = vector.broadcast %21 : vector<8x1xi32> to vector<8x80xi32>
    %23 = arith.cmpi sge, %6, %22 : vector<8x80xi32>
    %c16_i32_10 = arith.constant 16 : i32
    %24 = vector.broadcast %c16_i32_10 : i32 to vector<8x1xi32>
    %25 = arith.addi %21, %24 : vector<8x1xi32>
    %26 = vector.broadcast %25 : vector<8x1xi32> to vector<8x80xi32>
    %27 = arith.cmpi slt, %6, %26 : vector<8x80xi32>
    %28 = arith.andi %23, %27 : vector<8x80xi1>
    %29 = arith.select %28, %5, %2 : vector<8x80xi1>, vector<8x80xf32>
    %c0_11 = arith.constant 0 : index
    %c80 = arith.constant 80 : index
    %30 = vector.load %arg3[%c0_11, %c80] : memref<8x640xf32, #tpu.memory_space<vmem>>, vector<8x80xf32>
    tpu.vector_store %arg3[%c0_11, %c80], %29 {strides = array<i32>} : memref<8x640xf32, #tpu.memory_space<vmem>>, vector<8x80xf32>,
    %c0_12 = arith.constant 0 : index
    %c2 = arith.constant 2 : index
    %31 = vector.load %arg1[%c0_12, %c2] : memref<8x8xi32, #tpu.memory_space<vmem>>, vector<8x1xi32>
    %c16_i32_13 = arith.constant 16 : i32
    %32 = vector.broadcast %c16_i32_13 : i32 to vector<8x1xi32>
    %33 = arith.muli %31, %32 : vector<8x1xi32>
    %34 = vector.broadcast %33 : vector<8x1xi32> to vector<8x80xi32>
    %35 = arith.cmpi sge, %6, %34 : vector<8x80xi32>
    %c16_i32_14 = arith.constant 16 : i32
    %36 = vector.broadcast %c16_i32_14 : i32 to vector<8x1xi32>
    %37 = arith.addi %33, %36 : vector<8x1xi32>
    %38 = vector.broadcast %37 : vector<8x1xi32> to vector<8x80xi32>
    %39 = arith.cmpi slt, %6, %38 : vector<8x80xi32>
    %40 = arith.andi %35, %39 : vector<8x80xi1>
    %41 = arith.select %40, %5, %2 : vector<8x80xi1>, vector<8x80xf32>
    %c0_15 = arith.constant 0 : index
    %c160 = arith.constant 160 : index
    %42 = vector.load %arg3[%c0_15, %c160] : memref<8x640xf32, #tpu.memory_space<vmem>>, vector<8x80xf32>
    tpu.vector_store %arg3[%c0_15, %c160], %41 {strides = array<i32>} : memref<8x640xf32, #tpu.memory_space<vmem>>, vector<8x80xf32>,
    %c0_16 = arith.constant 0 : index
    %c3 = arith.constant 3 : index
    %43 = vector.load %arg1[%c0_16, %c3] : memref<8x8xi32, #tpu.memory_space<vmem>>, vector<8x1xi32>
    %c16_i32_17 = arith.constant 16 : i32
    %44 = vector.broadcast %c16_i32_17 : i32 to vector<8x1xi32>
    %45 = arith.muli %43, %44 : vector<8x1xi32>
    %46 = vector.broadcast %45 : vector<8x1xi32> to vector<8x80xi32>
    %47 = arith.cmpi sge, %6, %46 : vector<8x80xi32>
    %c16_i32_18 = arith.constant 16 : i32
    %48 = vector.broadcast %c16_i32_18 : i32 to vector<8x1xi32>
    %49 = arith.addi %45, %48 : vector<8x1xi32>
    %50 = vector.broadcast %49 : vector<8x1xi32> to vector<8x80xi32>
    %51 = arith.cmpi slt, %6, %50 : vector<8x80xi32>
    %52 = arith.andi %47, %51 : vector<8x80xi1>
    %53 = arith.select %52, %5, %2 : vector<8x80xi1>, vector<8x80xf32>
    %c0_19 = arith.constant 0 : index
    %c240 = arith.constant 240 : index
    %54 = vector.load %arg3[%c0_19, %c240] : memref<8x640xf32, #tpu.memory_space<vmem>>, vector<8x80xf32>
    tpu.vector_store %arg3[%c0_19, %c240], %53 {strides = array<i32>} : memref<8x640xf32, #tpu.memory_space<vmem>>, vector<8x80xf32>,
    %c0_20 = arith.constant 0 : index
    %c4 = arith.constant 4 : index
    %55 = vector.load %arg1[%c0_20, %c4] : memref<8x8xi32, #tpu.memory_space<vmem>>, vector<8x1xi32>
    %c16_i32_21 = arith.constant 16 : i32
    %56 = vector.broadcast %c16_i32_21 : i32 to vector<8x1xi32>
    %57 = arith.muli %55, %56 : vector<8x1xi32>
    %58 = vector.broadcast %57 : vector<8x1xi32> to vector<8x80xi32>
    %59 = arith.cmpi sge, %6, %58 : vector<8x80xi32>
    %c16_i32_22 = arith.constant 16 : i32
    %60 = vector.broadcast %c16_i32_22 : i32 to vector<8x1xi32>
    %61 = arith.addi %57, %60 : vector<8x1xi32>
    %62 = vector.broadcast %61 : vector<8x1xi32> to vector<8x80xi32>
    %63 = arith.cmpi slt, %6, %62 : vector<8x80xi32>
    %64 = arith.andi %59, %63 : vector<8x80xi1>
    %65 = arith.select %64, %5, %2 : vector<8x80xi1>, vector<8x80xf32>
    %c0_23 = arith.constant 0 : index
    %c320 = arith.constant 320 : index
    %66 = vector.load %arg3[%c0_23, %c320] : memref<8x640xf32, #tpu.memory_space<vmem>>, vector<8x80xf32>
    tpu.vector_store %arg3[%c0_23, %c320], %65 {strides = array<i32>} : memref<8x640xf32, #tpu.memory_space<vmem>>, vector<8x80xf32>,
    %c0_24 = arith.constant 0 : index
    %c5 = arith.constant 5 : index
    %67 = vector.load %arg1[%c0_24, %c5] : memref<8x8xi32, #tpu.memory_space<vmem>>, vector<8x1xi32>
    %c16_i32_25 = arith.constant 16 : i32
    %68 = vector.broadcast %c16_i32_25 : i32 to vector<8x1xi32>
    %69 = arith.muli %67, %68 : vector<8x1xi32>
    %70 = vector.broadcast %69 : vector<8x1xi32> to vector<8x80xi32>
    %71 = arith.cmpi sge, %6, %70 : vector<8x80xi32>
    %c16_i32_26 = arith.constant 16 : i32
    %72 = vector.broadcast %c16_i32_26 : i32 to vector<8x1xi32>
    %73 = arith.addi %69, %72 : vector<8x1xi32>
    %74 = vector.broadcast %73 : vector<8x1xi32> to vector<8x80xi32>
    %75 = arith.cmpi slt, %6, %74 : vector<8x80xi32>
    %76 = arith.andi %71, %75 : vector<8x80xi1>
    %77 = arith.select %76, %5, %2 : vector<8x80xi1>, vector<8x80xf32>
    %c0_27 = arith.constant 0 : index
    %c400 = arith.constant 400 : index
    %78 = vector.load %arg3[%c0_27, %c400] : memref<8x640xf32, #tpu.memory_space<vmem>>, vector<8x80xf32>
    tpu.vector_store %arg3[%c0_27, %c400], %77 {strides = array<i32>} : memref<8x640xf32, #tpu.memory_space<vmem>>, vector<8x80xf32>,
    %c0_28 = arith.constant 0 : index
    %c6 = arith.constant 6 : index
    %79 = vector.load %arg1[%c0_28, %c6] : memref<8x8xi32, #tpu.memory_space<vmem>>, vector<8x1xi32>
    %c16_i32_29 = arith.constant 16 : i32
    %80 = vector.broadcast %c16_i32_29 : i32 to vector<8x1xi32>
    %81 = arith.muli %79, %80 : vector<8x1xi32>
    %82 = vector.broadcast %81 : vector<8x1xi32> to vector<8x80xi32>
    %83 = arith.cmpi sge, %6, %82 : vector<8x80xi32>
    %c16_i32_30 = arith.constant 16 : i32
    %84 = vector.broadcast %c16_i32_30 : i32 to vector<8x1xi32>
    %85 = arith.addi %81, %84 : vector<8x1xi32>
    %86 = vector.broadcast %85 : vector<8x1xi32> to vector<8x80xi32>
    %87 = arith.cmpi slt, %6, %86 : vector<8x80xi32>
    %88 = arith.andi %83, %87 : vector<8x80xi1>
    %89 = arith.select %88, %5, %2 : vector<8x80xi1>, vector<8x80xf32>
    %c0_31 = arith.constant 0 : index
    %c480 = arith.constant 480 : index
    %90 = vector.load %arg3[%c0_31, %c480] : memref<8x640xf32, #tpu.memory_space<vmem>>, vector<8x80xf32>
    tpu.vector_store %arg3[%c0_31, %c480], %89 {strides = array<i32>} : memref<8x640xf32, #tpu.memory_space<vmem>>, vector<8x80xf32>,
    %c0_32 = arith.constant 0 : index
    %c7 = arith.constant 7 : index
    %91 = vector.load %arg1[%c0_32, %c7] : memref<8x8xi32, #tpu.memory_space<vmem>>, vector<8x1xi32>
    %c16_i32_33 = arith.constant 16 : i32
    %92 = vector.broadcast %c16_i32_33 : i32 to vector<8x1xi32>
    %93 = arith.muli %91, %92 : vector<8x1xi32>
    %94 = vector.broadcast %93 : vector<8x1xi32> to vector<8x80xi32>
    %95 = arith.cmpi sge, %6, %94 : vector<8x80xi32>
    %c16_i32_34 = arith.constant 16 : i32
    %96 = vector.broadcast %c16_i32_34 : i32 to vector<8x1xi32>
    %97 = arith.addi %93, %96 : vector<8x1xi32>
    %98 = vector.broadcast %97 : vector<8x1xi32> to vector<8x80xi32>
    %99 = arith.cmpi slt, %6, %98 : vector<8x80xi32>
    %100 = arith.andi %95, %99 : vector<8x80xi1>
    %101 = arith.select %100, %5, %2 : vector<8x80xi1>, vector<8x80xf32>
    %c0_35 = arith.constant 0 : index
    %c560 = arith.constant 560 : index
    %102 = vector.load %arg3[%c0_35, %c560] : memref<8x640xf32, #tpu.memory_space<vmem>>, vector<8x80xf32>
    tpu.vector_store %arg3[%c0_35, %c560], %101 {strides = array<i32>} : memref<8x640xf32, #tpu.memory_space<vmem>>, vector<8x80xf32>,
    return
  }
  func.func @transform_0(%arg0: i32) -> (i32, i32) {
    %c0_i32 = arith.constant 0 : i32
    %c0_i32_0 = arith.constant 0 : i32
    return %arg0, %c0_i32 : i32, i32
  }
  func.func @transform_1(%arg0: i32) -> (i32, i32) {
    %c0_i32 = arith.constant 0 : i32
    %c0_i32_0 = arith.constant 0 : i32
    %c0_i32_1 = arith.constant 0 : i32
    return %c0_i32, %c0_i32_0 : i32, i32
  }
  func.func @transform_2(%arg0: i32) -> (i32, i32) {
    %c0_i32 = arith.constant 0 : i32
    %c0_i32_0 = arith.constant 0 : i32
    return %arg0, %c0_i32 : i32, i32
  }
}

</mosaic_0001>

<llo_original>
// kernel: tpu_custom_call.1
$region0: #{tpu_custom_call.1}
  #allocation0 [shape = 'u32[]', space=smem, size = 0x4, offset = 0x4, fixed_abs, tag = 'smem constant byte address 0x4 - core index']
  #allocation1 [shape = 'u32[144,128]{1,0:T(1,128)}', space=vmem, size = 0x12000, scoped, tag = 'internal scratch']
  %s0 = inlined_call_operand.vmem [shape: s32[16,8], index: 0, kind: input, shape index: {}]
  %s1 = inlined_call_operand.vmem [shape: f32[2,80], index: 1, kind: input, shape index: {}]
  %s2 = inlined_call_operand.hbm [shape: f32[16,640], index: 2, kind: output, shape index: {}]
  %s3 = sld [smem:[#allocation0]]
  $region41: #{tpu_custom_call.1} parent=0
    _
  %s5 = ssub.s32 1, %s3
  %s6 = scalar_select 0, %s5, %s3
  $region1: #{tpu_custom_call.1} parent=0
    #allocation2 [shape = 'u8[40960]{0}', space=vmem, size = 0xa000, scoped, tag = 'output window, operand 0']
    #allocation3 [shape = 's32[2]{0}', space=sflag, size = 0x8, scoped, tag = 'scoped memory for tpu_custom_call.1']
    %7 = vsyncpa [#allocation3], 0
    %s8 = scalar_lea.sflag [#allocation3], 1
    %9 = vsyncpa %s8, 0
    loop: start=0, step=1, limit=4
    $region2: #{tpu_custom_call.1} parent=1 // loop_pre_header
      _
    $region3: #{tpu_custom_call.1} parent=1 // loop_header
      %s11 = sphi 0, %s15
      %p12 = scmp.ge.s32.totalorder %s11, 4
      %s21 = sphi 0, %s23
      %s24 = sphi 0, %s21
      %s25 = sphi 0, %s24
      %s41 = sphi 0, %s25
      %s45 = sphi 0, %s45
      %s47 = sphi 0, %s45
      %s48 = sphi 0, %s47
      %s62 = sphi 0, %s48
      %s68 = sphi 0, %s70
      %s71 = sphi 0, %s68
      %s72 = sphi 0, %s71
      %s88 = sphi 0, %s72
    $region4: #{tpu_custom_call.1} parent=1 // loop_header_branch
      %14 = sbr.rel (%p12) target = $region8
    $region5: #{tpu_custom_call.1} parent=1 // loop_body
      %s16 = ssub.s32 %s11, 1
      %s17 = ssub.s32 %s11, 2
      %s18 = sadd.s32 %s11, 1
      %s19 = ssub.s32 %s11, %s18
      %p20 = scmp.eq.s32.totalorder %s19, 0
      %s22 = sadd.s32 %s21, 1
      %s23 = scalar_select %p20, %s21, %s22
      %p26 = pneg %p20
      %p27 = scmp.eq.s32.totalorder %s11, 1
      %p28 = por %p26, %p27
      %p29 = scmp.ne.s32.totalorder %s21, %s24
      %p30 = scmp.eq.s32.totalorder %s11, 0
      %p31 = por %p29, %p30
      %p32 = scmp.ne.s32.totalorder %s21, %s24
      %p33 = scmp.eq.s32.totalorder %s16, 1
      %p34 = por %p32, %p33
      %p35 = scmp.ne.s32.totalorder %s24, %s25
      %p36 = scmp.eq.s32.totalorder %s16, 0
      %p37 = por %p35, %p36
      %p38 = scmp.ne.s32.totalorder %s24, %s25
      %p39 = scmp.eq.s32.totalorder %s17, 1
      %p40 = por %p38, %p39
      %p42 = scmp.ne.s32.totalorder %s25, %s41
      %p43 = scmp.eq.s32.totalorder %s17, 0
      %p44 = por %p42, %p43
      %s46 = sadd.s32 %s45, 1
      %p49 = scmp.eq.s32.totalorder %s11, 1
      %p50 = scmp.ne.s32.totalorder %s45, %s47
      %p51 = scmp.eq.s32.totalorder %s11, 0
      %p52 = por %p50, %p51
      %p53 = scmp.ne.s32.totalorder %s45, %s47
      %p54 = scmp.eq.s32.totalorder %s16, 1
      %p55 = por %p53, %p54
      %p56 = scmp.ne.s32.totalorder %s47, %s48
      %p57 = scmp.eq.s32.totalorder %s16, 0
      %p58 = por %p56, %p57
      %p59 = scmp.ne.s32.totalorder %s47, %s48
      %p60 = scmp.eq.s32.totalorder %s17, 1
      %p61 = por %p59, %p60
      %p63 = scmp.ne.s32.totalorder %s48, %s62
      %p64 = scmp.eq.s32.totalorder %s17, 0
      %p65 = por %p63, %p64
      %s66 = ssub.s32 %s11, %s18
      %p67 = scmp.eq.s32.totalorder %s66, 0
      %s69 = sadd.s32 %s68, 1
      %s70 = scalar_select %p67, %s68, %s69
      %p73 = pneg %p67
      %p74 = scmp.eq.s32.totalorder %s11, 1
      %p75 = por %p73, %p74
      %p76 = scmp.ne.s32.totalorder %s68, %s71
      %p77 = scmp.eq.s32.totalorder %s11, 0
      %p78 = por %p76, %p77
      %p79 = scmp.ne.s32.totalorder %s68, %s71
      %p80 = scmp.eq.s32.totalorder %s16, 1
      %p81 = por %p79, %p80
      %p82 = scmp.ne.s32.totalorder %s71, %s72
      %p83 = scmp.eq.s32.totalorder %s16, 0
      %p84 = por %p82, %p83
      %p85 = scmp.ne.s32.totalorder %s71, %s72
      %p86 = scmp.eq.s32.totalorder %s17, 1
      %p87 = por %p85, %p86
      %p89 = scmp.ne.s32.totalorder %s72, %s88
      %p90 = scmp.eq.s32.totalorder %s17, 0
      %p91 = por %p89, %p90
      %p92 = scmp.le.s32.totalorder 1, %s11
      %p93 = scmp.lt.s32.totalorder %s11, 3
      %p94 = pnand %p92, %p93
      %p95 = pneg %p94
      // Predicated region
      $region9: #{tpu_custom_call.1} parent=5 // pred_check
        _
      $region10: #{tpu_custom_call.1} parent=5 // pred_check_branch
        %97 = sbr.rel (%p94) target = $region12
      $region11: #{tpu_custom_call.1} parent=5 // pred_region
        %s98 = ssub.s32 %s11, 1
        // Predicated region
        $region13: #{tpu_custom_call.1} parent=11 // pred_check
          %p99 = pneg %p58
        $region14: #{tpu_custom_call.1} parent=11 // pred_check_branch
          %101 = sbr.rel (%p99) target = $region16
        $region15: #{tpu_custom_call.1} parent=11 // pred_region
          _
        $region16: #{tpu_custom_call.1} parent=11 // pred_fallthru
          _
      $region12: #{tpu_custom_call.1} parent=5 // pred_fallthru
        _
      %p102 = scmp.lt.s32.totalorder %s11, 2
      // Predicated region
      $region17: #{tpu_custom_call.1} parent=5 // pred_check
        %p103 = pneg %p102
      $region18: #{tpu_custom_call.1} parent=5 // pred_check_branch
        %105 = sbr.rel (%p103) target = $region20
      $region19: #{tpu_custom_call.1} parent=5 // pred_region
        // Predicated region
        $region21: #{tpu_custom_call.1} parent=19 // pred_check
          %p106 = pneg %p31
        $region22: #{tpu_custom_call.1} parent=19 // pred_check_branch
          %108 = sbr.rel (%p106) target = $region24
        $region23: #{tpu_custom_call.1} parent=19 // pred_region
          %p109 = scmp.lt.s32.totalorder %s11, 1
          %s110 = scalar_select %p109, %s11, 1
          %s111 = smul.addr %s110, 8
          %s112 = scalar_lea.vmem %s0, %s111
        $region24: #{tpu_custom_call.1} parent=19 // pred_fallthru
          _
      $region20: #{tpu_custom_call.1} parent=5 // pred_fallthru
        _
      %p113 = scmp.le.s32.totalorder 1, %s11
      %p114 = scmp.lt.s32.totalorder %s11, 3
      %p115 = pnand %p113, %p114
      %p116 = pneg %p115
      // Predicated region
      $region25: #{tpu_custom_call.1} parent=5 // pred_check
        _
      $region26: #{tpu_custom_call.1} parent=5 // pred_check_branch
        %118 = sbr.rel (%p115) target = $region28
      $region27: #{tpu_custom_call.1} parent=5 // pred_region
        %s119 = ssub.s32 %s11, 1
        %p120 = scmp.lt.s32.totalorder %s16, 1
        %s121 = scalar_select %p120, %s16, 1
        %s122 = smul.addr %s121, 8
        %s123 = scalar_lea.vmem %s0, %s122
        %p124 = pneg %p37
        %p125 = pneg %p34
        %p126 = pneg %p58
        %p127 = pneg %p55
        %p128 = pneg %p84
        %p129 = pneg %p81
        %s130 = sand.u32 %s71, 1
        %s131 = scalar_lea.sflag [#allocation3], %s130
        %s132 = sand.u32 %s71, 1
        %s133 = smul.addr %s132, 40
        %s134 = scalar_lea.vmem [#allocation2], %s133
        %p135 = scmp.lt.s32.totalorder %s16, 1
        %s136 = scalar_select %p135, %s16, 1
        %s137 = smul.addr %s136, 8
        %s138 = scalar_lea.vmem %s0, %s137
        %v139 = vld [vmem:[%s1] sm:$0x1]
        %v140 = vlaneseq
        %v141 = vshrl.u32 %v140, 7
        %v142 = vsub.s32 0, %v141
        %v143 = vrot.slane %v139, %v142
        %v144 = vld [vmem:[%s1 + $0x1] sm:$0x1]
        %v145 = vlaneseq
        %v146 = vshrl.u32 %v145, 7
        %v147 = vsub.s32 0, %v146
        %v148 = vrot.slane %v144, %v147
        %v149 = vlaneseq
        %v150 = vand.u32 %v149, 127
        %v151 = vld [vmem:[%s138] sm:$0xff]
        %v152 = vmul.u32 %v151, 16
        %153 = vset.pattern.permute.xlu0 0
        %154 = vperm.xlu0 %153, %v152
        %v155 = vpop.permute.xlu0 %154
        %vm156 = vcmp.ge.s32.totalorder %v150, %v155
        %v157 = vadd.s32 %v152, 16
        %158 = vset.pattern.permute.xlu0 0
        %159 = vperm.xlu0 %158, %v157
        %v160 = vpop.permute.xlu0 %159
        %vm161 = vcmp.lt.s32.totalorder %v150, %v160
        %vm162 = vmand %vm156, %vm161
        %v163 = vsel %vm162, %v148, %v143
        %vm164 = vcmask 654336
        %165 = vst.msk [vmem:[%s134] sm:$0xff] %vm164, %v163
        %v166 = vld [vmem:[%s138] sm:$0xff]
        %v167 = vmul.u32 %v166, 16
        %168 = vset.pattern.permute.xlu0 1
        %169 = vperm.xlu0 %168, %v167
        %v170 = vpop.permute.xlu0 %169
        %vm171 = vcmp.ge.s32.totalorder %v150, %v170
        %v172 = vadd.s32 %v167, 16
        %173 = vset.pattern.permute.xlu0 1
        %174 = vperm.xlu0 %173, %v172
        %v175 = vpop.permute.xlu0 %174
        %vm176 = vcmp.lt.s32.totalorder %v150, %v175
        %vm177 = vmand %vm171, %vm176
        %v178 = vsel %vm177, %v148, %v143
        %180 = vrot.lane.b32.xlu0 %v178, 80
        %v181 = vpop.permute.xlu0 %180
        %vm183 = vcmask 1048192
        %184 = vst.msk [vmem:[%s134] sm:$0xff] %vm183, %v181
        %vm185 = vcmask 261120
        %186 = vst.msk [vmem:[%s134 + $0x8] sm:$0xff] %vm185, %v181
        %v187 = vld [vmem:[%s138] sm:$0xff]
        %v188 = vmul.u32 %v187, 16
        %189 = vset.pattern.permute.xlu0 2
        %190 = vperm.xlu0 %189, %v188
        %v191 = vpop.permute.xlu0 %190
        %vm192 = vcmp.ge.s32.totalorder %v150, %v191
        %v193 = vadd.s32 %v188, 16
        %194 = vset.pattern.permute.xlu0 2
        %195 = vperm.xlu0 %194, %v193
        %v196 = vpop.permute.xlu0 %195
        %vm197 = vcmp.lt.s32.totalorder %v150, %v196
        %vm198 = vmand %vm192, %vm197
        %v199 = vsel %vm198, %v148, %v143
        %201 = vrot.lane.b32.xlu0 %v199, 32
        %v202 = vpop.permute.xlu0 %201
        %vm204 = vcmask 916736
        %205 = vst.msk [vmem:[%s134 + $0x8] sm:$0xff] %vm204, %v202
        %v206 = vld [vmem:[%s138] sm:$0xff]
        %v207 = vmul.u32 %v206, 16
        %208 = vset.pattern.permute.xlu0 3
        %209 = vperm.xlu0 %208, %v207
        %v210 = vpop.permute.xlu0 %209
        %vm211 = vcmp.ge.s32.totalorder %v150, %v210
        %v212 = vadd.s32 %v207, 16
        %213 = vset.pattern.permute.xlu0 3
        %214 = vperm.xlu0 %213, %v212
        %v215 = vpop.permute.xlu0 %214
        %vm216 = vcmp.lt.s32.totalorder %v150, %v215
        %vm217 = vmand %vm211, %vm216
        %v218 = vsel %vm217, %v148, %v143
        %220 = vrot.lane.b32.xlu0 %v218, 112
        %v221 = vpop.permute.xlu0 %220
        %vm223 = vcmask 1048448
        %224 = vst.msk [vmem:[%s134 + $0x8] sm:$0xff] %vm223, %v221
        %vm225 = vcmask 523264
        %226 = vst.msk [vmem:[%s134 + $0x10] sm:$0xff] %vm225, %v221
        %v227 = vld [vmem:[%s138] sm:$0xff]
        %v228 = vmul.u32 %v227, 16
        %229 = vset.pattern.permute.xlu0 4
        %230 = vperm.xlu0 %229, %v228
        %v231 = vpop.permute.xlu0 %230
        %vm232 = vcmp.ge.s32.totalorder %v150, %v231
        %v233 = vadd.s32 %v228, 16
        %234 = vset.pattern.permute.xlu0 4
        %235 = vperm.xlu0 %234, %v233
        %v236 = vpop.permute.xlu0 %235
        %vm237 = vcmp.lt.s32.totalorder %v150, %v236
        %vm238 = vmand %vm232, %vm237
        %v239 = vsel %vm238, %v148, %v143
        %241 = vrot.lane.b32.xlu0 %v239, 64
        %v242 = vpop.permute.xlu0 %241
        %vm244 = vcmask 1048064
        %245 = vst.msk [vmem:[%s134 + $0x10] sm:$0xff] %vm244, %v242
        %vm246 = vcmask 130048
        %247 = vst.msk [vmem:[%s134 + $0x18] sm:$0xff] %vm246, %v242
        %v248 = vld [vmem:[%s138] sm:$0xff]
        %v249 = vmul.u32 %v248, 16
        %250 = vset.pattern.permute.xlu0 5
        %251 = vperm.xlu0 %250, %v249
        %v252 = vpop.permute.xlu0 %251
        %vm253 = vcmp.ge.s32.totalorder %v150, %v252
        %v254 = vadd.s32 %v249, 16
        %255 = vset.pattern.permute.xlu0 5
        %256 = vperm.xlu0 %255, %v254
        %v257 = vpop.permute.xlu0 %256
        %vm258 = vcmp.lt.s32.totalorder %v150, %v257
        %vm259 = vmand %vm253, %vm258
        %v260 = vsel %vm259, %v148, %v143
        %262 = vrot.lane.b32.xlu0 %v260, 16
        %v263 = vpop.permute.xlu0 %262
        %vm265 = vcmask 785536
        %266 = vst.msk [vmem:[%s134 + $0x18] sm:$0xff] %vm265, %v263
        %v267 = vld [vmem:[%s138] sm:$0xff]
        %v268 = vmul.u32 %v267, 16
        %269 = vset.pattern.permute.xlu0 6
        %270 = vperm.xlu0 %269, %v268
        %v271 = vpop.permute.xlu0 %270
        %vm272 = vcmp.ge.s32.totalorder %v150, %v271
        %v273 = vadd.s32 %v268, 16
        %274 = vset.pattern.permute.xlu0 6
        %275 = vperm.xlu0 %274, %v273
        %v276 = vpop.permute.xlu0 %275
        %vm277 = vcmp.lt.s32.totalorder %v150, %v276
        %vm278 = vmand %vm272, %vm277
        %v279 = vsel %vm278, %v148, %v143
        %281 = vrot.lane.b32.xlu0 %v279, 96
        %v282 = vpop.permute.xlu0 %281
        %vm284 = vcmask 1048320
        %285 = vst.msk [vmem:[%s134 + $0x18] sm:$0xff] %vm284, %v282
        %vm286 = vcmask 392192
        %287 = vst.msk [vmem:[%s134 + $0x20] sm:$0xff] %vm286, %v282
        %v288 = vld [vmem:[%s138] sm:$0xff]
        %v289 = vmul.u32 %v288, 16
        %290 = vset.pattern.permute.xlu0 7
        %291 = vperm.xlu0 %290, %v289
        %v292 = vpop.permute.xlu0 %291
        %vm293 = vcmp.ge.s32.totalorder %v150, %v292
        %v294 = vadd.s32 %v289, 16
        %295 = vset.pattern.permute.xlu0 7
        %296 = vperm.xlu0 %295, %v294
        %v297 = vpop.permute.xlu0 %296
        %vm298 = vcmp.lt.s32.totalorder %v150, %v297
        %vm299 = vmand %vm293, %vm298
        %v300 = vsel %vm299, %v148, %v143
        %302 = vrot.lane.b32.xlu0 %v300, 48
        %v303 = vpop.permute.xlu0 %302
        %vm305 = vcmask 1047936
        %306 = vst.msk [vmem:[%s134 + $0x20] sm:$0xff] %vm305, %v303
        %s307 = sand.u32 %s71, 1
        %s308 = scalar_lea.sflag [#allocation3], %s307
        %s309 = sand.u32 %s71, 1
        %s310 = smul.addr %s309, 40
        %s311 = scalar_lea.vmem [#allocation2], %s310
        // Predicated region
        $region29: #{tpu_custom_call.1} parent=27 // pred_check
          %p312 = pneg %p81
        $region30: #{tpu_custom_call.1} parent=27 // pred_check_branch
          %314 = sbr.rel (%p312) target = $region32
        $region31: #{tpu_custom_call.1} parent=27 // pred_region
          %s316 = ssub.s32 640, 640
          %317 = vsyncadd %s308, %s316
          %s318 = smul.addr %s16, 5
          %s319 = smul.addr %s318, 128
          %s320 = scalar_lea.hbm %s2, %s319
          %s322 = sshll.u32 %s311, 4
          %s323 = int_to_ptr.vmem [resolvable:$true] %s322
          %325 = dma.vmem_to_hbm [thread:$0]  %s323, 640, %s320, %s308
        $region32: #{tpu_custom_call.1} parent=27 // pred_fallthru
          _
      $region28: #{tpu_custom_call.1} parent=5 // pred_fallthru
        _
      %p326 = scmp.le.s32.totalorder 2, %s11
      // Predicated region
      $region33: #{tpu_custom_call.1} parent=5 // pred_check
        %p327 = pneg %p326
      $region34: #{tpu_custom_call.1} parent=5 // pred_check_branch
        %329 = sbr.rel (%p327) target = $region36
      $region35: #{tpu_custom_call.1} parent=5 // pred_region
        %s330 = ssub.s32 %s11, 2
        // Predicated region
        $region37: #{tpu_custom_call.1} parent=35 // pred_check
          %p331 = pneg %p87
        $region38: #{tpu_custom_call.1} parent=35 // pred_check_branch
          %333 = sbr.rel (%p331) target = $region40
        $region39: #{tpu_custom_call.1} parent=35 // pred_region
          %s334 = sand.u32 %s72, 1
          %s335 = scalar_lea.sflag [#allocation3], %s334
          %s336 = sand.u32 %s72, 1
          %s337 = smul.addr %s336, 40
          %s338 = scalar_lea.vmem [#allocation2], %s337
          %339 = dma.done %s335, 640
        $region40: #{tpu_custom_call.1} parent=35 // pred_fallthru
          _
      $region36: #{tpu_custom_call.1} parent=5 // pred_fallthru
        _
    $region6: #{tpu_custom_call.1} parent=1 // loop_footer
      %s15 = sadd.s32 1, %s11
    $region7: #{tpu_custom_call.1} parent=1 // loop_footer_branch
      %10 = sbr.rel target = $region3
    $region8: #{tpu_custom_call.1} parent=1 // loop_exit
      _
    %340 = vsyncpa [#allocation3], 1
    %s341 = scalar_lea.sflag [#allocation3], 1
    %342 = vsyncpa %s341, 1

</llo_original>
